<compile_context>
chip_gen: v6e
topology: v6e:2x2x1
jax: 0.10.0
libtpu: 0.0.40
codegen_flags: <defaults>
</compile_context>

<pallas_src>
import functools

import jax
import jax.numpy as jnp
from jax.experimental import pallas as pl
from jax.experimental.pallas import tpu as pltpu

KERNEL_SIZE = 7
STRIDE = 2
LEFT_CTX = 3          # deepest input shift used (even taps 0,2,4,6 -> shifts 0..3)
LN_EPS = 1e-5


def _upsample_kernel(x_ref, w_ref, b_ref, g2_ref, bt2_ref, o_ref, carry_ref, *,
                     fuse):
    """One (batch, time-tile) grid step.

    x_ref    : (1, Tt, Cin)   f32   input tile
    w_ref    : fuse -> (4*Cin, 2*Cout) bf16 ; else (4, Cin, 2*Cout) bf16
    b_ref    : (1, 2*Cout)    f32   conv bias duplicated (even | odd halves)
    g2_ref   : (1, 2*Cout)    f32   LN gamma duplicated
    bt2_ref  : (1, 2*Cout)    f32   LN beta duplicated
    o_ref    : (1, Tt, 2*Cout) f32  packed output: even in [:Cout], odd in [Cout:]
    carry_ref: (3, Cin)       bf16  VMEM scratch: last 3 input rows of the
               previous time tile (time axis runs sequentially per batch).
    """
    ti = pl.program_id(1)

    @pl.when(ti == 0)
    def _():
        carry_ref[...] = jnp.zeros_like(carry_ref)

    Tt = x_ref.shape[1]
    cout2 = o_ref.shape[2]
    cout = cout2 // 2

    # bf16 feeds the MXU on v5e/v6e/v7x; accumulation stays f32.
    xb = x_ref[0].astype(jnp.bfloat16)                        # (Tt, Cin)
    xp = jnp.concatenate([carry_ref[...], xb], axis=0)        # (Tt+3, Cin)
    carry_ref[...] = xb[Tt - LEFT_CTX:, :]                    # carry for tile ti+1

    if fuse:
        # Small Cin: one MXU call over the im2col slab (Tt, 4*Cin)@(4*Cin, 2*Cout).
        x4 = jnp.concatenate(
            [xp[LEFT_CTX - j:LEFT_CTX - j + Tt, :] for j in range(4)], axis=-1)
        y = jnp.dot(x4, w_ref[...], preferred_element_type=jnp.float32)
    else:
        # Large Cin (>=128): each K=Cin matmul already fills the MXU -> skip the
        # 4x slab and accumulate 4 shifted matmuls in f32.
        y = jnp.dot(xp[LEFT_CTX:, :], w_ref[0],
                    preferred_element_type=jnp.float32)
        for j in range(1, 4):
            y = y + jnp.dot(xp[LEFT_CTX - j:LEFT_CTX - j + Tt, :], w_ref[j],
                            preferred_element_type=jnp.float32)
    y = y + b_ref[...]                                        # (Tt, 2*Cout) f32

    # Exact erf GELU (matches torch F.gelu default).  erf lowers to a VPU
    # polynomial (not the EUP); kept for exact parity with the module.
    y = 0.5 * y * (1.0 + jax.lax.erf(y * 0.7071067811865476))

    # Fused even|odd LayerNorm directly on the packed (Tt, 2*Cout) layout:
    # per-half statistics (var = E[x^2] - mu^2, one pass) applied through a
    # lane-index select so the result goes out with a single full-width store.
    ye = y[:, :cout]
    yo = y[:, cout:]
    mu_e = jnp.mean(ye, axis=-1, keepdims=True)
    mu_o = jnp.mean(yo, axis=-1, keepdims=True)
    var_e = jnp.mean(ye * ye, axis=-1, keepdims=True) - mu_e * mu_e
    var_o = jnp.mean(yo * yo, axis=-1, keepdims=True) - mu_o * mu_o
    lane = jax.lax.broadcasted_iota(jnp.int32, y.shape, 1)
    is_even = lane < cout
    mu = jnp.where(is_even, mu_e, mu_o)
    rstd = jnp.where(is_even, jax.lax.rsqrt(var_e + LN_EPS),
                     jax.lax.rsqrt(var_o + LN_EPS))
    # Dropout: identity at inference.
    o_ref[0] = ((y - mu) * rstd * g2_ref[...] + bt2_ref[...]).astype(o_ref.dtype)


def _device_defaults():
    kind = jax.devices()[0].device_kind.lower()
    if "v7" in kind:
        # v7x: 64 MiB physical / 32 MiB scoped VMEM per TC -> smaller tile.
        return 256, 48 * 1024 * 1024
    if "v6" in kind or "v5" in kind:
        # v5e/v6e: 128 MiB VMEM; big tiles amortize the ~0.35us/step overhead.
        return 512, 96 * 1024 * 1024
    return 256, None


def upsample_pallas(x, w, b, gamma, beta, *, tile_t=None, fuse_taps=None):
    """x: (B, T, Cin) f32; w: (K, Cin, Cout) tap-major (w[k,i,o] = torch_w[i,o,k]).

    Returns (B, 2*T, Cout) f32.
    """
    B, T, Cin = x.shape
    K, Cin2, Cout = w.shape
    assert K == KERNEL_SIZE and Cin2 == Cin

    default_tile, vmem_limit = _device_defaults()
    if tile_t is None:
        tile_t = default_tile
    # Hard requirement: multiple of 8 sublanes.  (Prefer multiples of 256 on
    # v6e/v7x and 128 on v5e for full MXU passes; the defaults already are.)
    tile_t = max(8, (tile_t // 8) * 8)
    tile_t = min(tile_t, ((T + 7) // 8) * 8)
    n_t = pl.cdiv(T, tile_t)
    Tp = n_t * tile_t
    x_in = x if Tp == T else jnp.pad(x, ((0, 0), (0, Tp - T), (0, 0)))

    if fuse_taps is None:
        fuse_taps = Cin < 128

    # Weight packing (bf16): w4[j, :, :Cout] = W[2j] (even taps),
    # w4[j, :, Cout:] = W[2j+1] (odd taps; 4th odd tap is zero).
    zeros = jnp.zeros((Cin, Cout), w.dtype)
    w4 = jnp.stack(
        [jnp.concatenate([w[2 * j], w[2 * j + 1] if j < 3 else zeros], axis=-1)
         for j in range(4)], axis=0).astype(jnp.bfloat16)       # (4, Cin, 2*Cout)

    if fuse_taps:
        w_arg = w4.reshape(4 * Cin, 2 * Cout)
        w_spec = pl.BlockSpec((4 * Cin, 2 * Cout), lambda bi, ti: (0, 0),
                              pipeline_mode=pl.Buffered(1))
    else:
        w_arg = w4
        w_spec = pl.BlockSpec((4, Cin, 2 * Cout), lambda bi, ti: (0, 0, 0),
                              pipeline_mode=pl.Buffered(1))

    b2 = jnp.concatenate([b, b]).reshape(1, 2 * Cout).astype(jnp.float32)
    g2 = jnp.concatenate([gamma, gamma]).reshape(1, 2 * Cout).astype(jnp.float32)
    bt2 = jnp.concatenate([beta, beta]).reshape(1, 2 * Cout).astype(jnp.float32)

    def param_spec():
        return pl.BlockSpec((1, 2 * Cout), lambda bi, ti: (0, 0),
                            pipeline_mode=pl.Buffered(1))

    out = pl.pallas_call(
        functools.partial(_upsample_kernel, fuse=fuse_taps),
        out_shape=jax.ShapeDtypeStruct((B, Tp, 2 * Cout), jnp.float32),
        grid=(B, n_t),
        in_specs=[
            pl.BlockSpec((1, tile_t, Cin), lambda bi, ti: (bi, ti, 0)),
            w_spec,
            param_spec(),   # conv bias
            param_spec(),   # LN gamma
            param_spec(),   # LN beta
        ],
        out_specs=pl.BlockSpec((1, tile_t, 2 * Cout), lambda bi, ti: (bi, ti, 0)),
        scratch_shapes=[pltpu.VMEM((LEFT_CTX, Cin), jnp.bfloat16)],
        compiler_params=pltpu.CompilerParams(
            # Batch tiles are independent (megacore-parallel on v7x); the time
            # axis carries the 3-row left context in VMEM -> must stay in order.
            dimension_semantics=("parallel", "arbitrary"),
            vmem_limit_bytes=vmem_limit),
    )(x_in, w_arg, b2, g2, bt2)

    # (B, Tp, 2*Cout) -> (B, 2*Tp, Cout): even/odd interleave, then drop tail pad.
    y = out.reshape(B, 2 * Tp, Cout)
    return y[:, :2 * T, :]


def upsample_ref(x, w, b, gamma, beta):
    """Plain-JAX reference: full ConvTranspose1d + causal right-trim, exact GELU,
    LayerNorm.  The conv matmul inputs are cast to bf16 (f32 accumulation) to
    mirror the kernel's MXU precision."""
    B, T, _ = x.shape
    Cout = w.shape[2]
    xb = x.astype(jnp.bfloat16)
    wb = w.astype(jnp.bfloat16)
    L_full = STRIDE * (T - 1) + KERNEL_SIZE
    y = jnp.zeros((B, L_full, Cout), jnp.float32)
    for k in range(KERNEL_SIZE):
        contrib = jnp.einsum("btc,co->bto", xb, wb[k],
                             preferred_element_type=jnp.float32)
        y = y.at[:, k:k + STRIDE * T:STRIDE, :].add(contrib)
    y = y[:, :STRIDE * T, :] + b        # causal: trim K - stride = 5 on the right
    y = 0.5 * y * (1.0 + jax.lax.erf(y / jnp.sqrt(2.0)))
    mu = y.mean(-1, keepdims=True)
    var = ((y - mu) ** 2).mean(-1, keepdims=True)
    return (y - mu) / jnp.sqrt(var + LN_EPS) * gamma + beta


if __name__ == "__main__":
    B, C_IN, C_OUT = 2, 4, 8

    key = jax.random.PRNGKey(0)
    kx, kw, kb, kg, kbt, kx2 = jax.random.split(key, 6)
    fan = C_IN * KERNEL_SIZE
    w = jax.random.normal(kw, (KERNEL_SIZE, C_IN, C_OUT), jnp.float32) / jnp.sqrt(fan)
    b = 0.1 * jax.random.normal(kb, (C_OUT,), jnp.float32)
    gamma = 1.0 + 0.1 * jax.random.normal(kg, (C_OUT,), jnp.float32)
    beta = 0.05 * jax.random.normal(kbt, (C_OUT,), jnp.float32)

    def check(y, r, name):
        assert y.shape == r.shape, (name, y.shape, r.shape)
        err = float(jnp.max(jnp.abs(y - r)))
        assert err < 2e-3, (name, err)   # bf16 MXU inputs, f32 accumulation

    # test 1: single time tile (fused-tap path)
    T1 = 8
    x1 = jax.random.normal(kx, (B, T1, C_IN), jnp.float32)
    r1 = upsample_ref(x1, w, b, gamma, beta)
    y1 = jax.block_until_ready(upsample_pallas(x1, w, b, gamma, beta))
    check(y1, r1, "single-tile")

    # test 2: multi-tile time grid (VMEM carry across tiles) + ragged-T padding
    T2 = 40
    x2 = jax.random.normal(kx2, (B, T2, C_IN), jnp.float32)
    r2 = upsample_ref(x2, w, b, gamma, beta)
    y2 = jax.block_until_ready(upsample_pallas(x2, w, b, gamma, beta, tile_t=16))
    check(y2, r2, "multi-tile")

    # test 3: force the accumulated-matmul path (the one used when C_in >= 128)
    y3 = jax.block_until_ready(
        upsample_pallas(x2, w, b, gamma, beta, tile_t=16, fuse_taps=False))
    check(y3, r2, "accum-path")

    print("KERNEL_OK")
</pallas_src>

<mosaic_0001>
module attributes {stable_mosaic.version = 11 : i64} {
  func.func @_upsample_kernel(%arg0: i32, %arg1: i32, %arg2: memref<1x8x4xf32, #tpu.memory_space<vmem>>, %arg3: memref<16x16xbf16, #tpu.memory_space<vmem>>, %arg4: memref<1x16xf32, #tpu.memory_space<vmem>>, %arg5: memref<1x16xf32, #tpu.memory_space<vmem>>, %arg6: memref<1x16xf32, #tpu.memory_space<vmem>>, %arg7: memref<1x8x16xf32, #tpu.memory_space<vmem>>, %arg8: memref<3x4xbf16, #tpu.memory_space<vmem>>) attributes {dimension_semantics = [#tpu.dimension_semantics<parallel>, #tpu.dimension_semantics<arbitrary>], iteration_bounds = array<i64: 2, 1>, scalar_prefetch = 0 : i64, scratch_operands = 1 : i64, tpu.core_type = #tpu.core_type<tc>, window_params = [{transform_indices = @transform_0, window_bounds = array<i64: 1, 8, 4>}, {pipeline_mode = #tpu.pipeline_mode<synchronous>, transform_indices = @transform_1, window_bounds = array<i64: 16, 16>}, {pipeline_mode = #tpu.pipeline_mode<synchronous>, transform_indices = @transform_2, window_bounds = array<i64: 1, 16>}, {pipeline_mode = #tpu.pipeline_mode<synchronous>, transform_indices = @transform_3, window_bounds = array<i64: 1, 16>}, {pipeline_mode = #tpu.pipeline_mode<synchronous>, transform_indices = @transform_4, window_bounds = array<i64: 1, 16>}, {transform_indices = @transform_5, window_bounds = array<i64: 1, 8, 16>}]} {
    %c0_i32 = arith.constant 0 : i32
    %0 = arith.cmpi eq, %arg1, %c0_i32 : i32
    %1 = arith.extui %0 : i1 to i32
    %c0_i32_0 = arith.constant 0 : i32
    %2 = arith.cmpi ne, %1, %c0_i32_0 : i32
    scf.if %2 {
      %cst_31 = arith.constant 0.000000e+00 : bf16
      %82 = vector.broadcast %cst_31 : bf16 to vector<3x4xbf16>
      %c0_32 = arith.constant 0 : index
      %c0_33 = arith.constant 0 : index
      %83 = vector.load %arg8[%c0_32, %c0_33] : memref<3x4xbf16, #tpu.memory_space<vmem>>, vector<3x4xbf16>
      tpu.vector_store %arg8[%c0_32, %c0_33], %82 {strides = array<i32>} : memref<3x4xbf16, #tpu.memory_space<vmem>>, vector<3x4xbf16>,
    } else {
    }
    %c0 = arith.constant 0 : index
    %c0_1 = arith.constant 0 : index
    %c0_2 = arith.constant 0 : index
    %3 = vector.load %arg2[%c0, %c0_1, %c0_2] : memref<1x8x4xf32, #tpu.memory_space<vmem>>, vector<1x8x4xf32>
    %4 = vector.shape_cast %3 : vector<1x8x4xf32> to vector<8x4xf32>
    %5 = arith.truncf %4 : vector<8x4xf32> to vector<8x4xbf16>
    %c0_3 = arith.constant 0 : index
    %c0_4 = arith.constant 0 : index
    %6 = vector.load %arg8[%c0_3, %c0_4] : memref<3x4xbf16, #tpu.memory_space<vmem>>, vector<3x4xbf16>
    %7 = tpu.concatenate %6, %5 in 0 : vector<3x4xbf16>, vector<8x4xbf16> -> vector<11x4xbf16>
    %8 = vector.extract_strided_slice %5 {offsets = [5, 0], sizes = [3, 4], strides = [1, 1]} : vector<8x4xbf16> to vector<3x4xbf16>
    %c0_5 = arith.constant 0 : index
    %c0_6 = arith.constant 0 : index
    %9 = vector.load %arg8[%c0_5, %c0_6] : memref<3x4xbf16, #tpu.memory_space<vmem>>, vector<3x4xbf16>
    tpu.vector_store %arg8[%c0_5, %c0_6], %8 {strides = array<i32>} : memref<3x4xbf16, #tpu.memory_space<vmem>>, vector<3x4xbf16>,
    %10 = vector.extract_strided_slice %7 {offsets = [3, 0], sizes = [8, 4], strides = [1, 1]} : vector<11x4xbf16> to vector<8x4xbf16>
    %11 = vector.extract_strided_slice %7 {offsets = [2, 0], sizes = [8, 4], strides = [1, 1]} : vector<11x4xbf16> to vector<8x4xbf16>
    %12 = vector.extract_strided_slice %7 {offsets = [1, 0], sizes = [8, 4], strides = [1, 1]} : vector<11x4xbf16> to vector<8x4xbf16>
    %13 = vector.extract_strided_slice %7 {offsets = [0, 0], sizes = [8, 4], strides = [1, 1]} : vector<11x4xbf16> to vector<8x4xbf16>
    %14 = tpu.concatenate %10, %11, %12, %13 in 1 : vector<8x4xbf16>, vector<8x4xbf16>, vector<8x4xbf16>, vector<8x4xbf16> -> vector<8x16xbf16>
    %c0_7 = arith.constant 0 : index
    %c0_8 = arith.constant 0 : index
    %15 = vector.load %arg3[%c0_7, %c0_8] : memref<16x16xbf16, #tpu.memory_space<vmem>>, vector<16x16xbf16>
    %cst = arith.constant dense<0.000000e+00> : vector<8x16xf32>
    %16 = tpu.matmul %14, %15, %cst {dimension_numbers = #tpu.dot_dimension_numbers<[1], [0], [0], [1], [0, 0, 1, 1], [], []>} : vector<8x16xbf16>, vector<16x16xbf16>, vector<8x16xf32> -> vector<8x16xf32>
    %c0_9 = arith.constant 0 : index
    %c0_10 = arith.constant 0 : index
    %17 = vector.load %arg4[%c0_9, %c0_10] : memref<1x16xf32, #tpu.memory_space<vmem>>, vector<1x16xf32>
    %18 = vector.broadcast %17 : vector<1x16xf32> to vector<8x16xf32>
    %19 = arith.addf %16, %18 : vector<8x16xf32>
    %cst_11 = arith.constant 5.000000e-01 : f32
    %20 = vector.broadcast %cst_11 : f32 to vector<8x16xf32>
    %21 = arith.mulf %20, %19 : vector<8x16xf32>
    %cst_12 = arith.constant 0.707106769 : f32
    %22 = vector.broadcast %cst_12 : f32 to vector<8x16xf32>
    %23 = arith.mulf %19, %22 : vector<8x16xf32>
    %24 = math.erf %23 : vector<8x16xf32>
    %cst_13 = arith.constant 1.000000e+00 : f32
    %25 = vector.broadcast %cst_13 : f32 to vector<8x16xf32>
    %26 = arith.addf %25, %24 : vector<8x16xf32>
    %27 = arith.mulf %21, %26 : vector<8x16xf32>
    %28 = vector.extract_strided_slice %27 {offsets = [0, 0], sizes = [8, 8], strides = [1, 1]} : vector<8x16xf32> to vector<8x8xf32>
    %29 = vector.extract_strided_slice %27 {offsets = [0, 8], sizes = [8, 8], strides = [1, 1]} : vector<8x16xf32> to vector<8x8xf32>
    %cst_14 = arith.constant dense<0.000000e+00> : vector<8xf32>
    %30 = vector.multi_reduction <add>, %28, %cst_14 [1] : vector<8x8xf32> to vector<8xf32>
    %31 = vector.shape_cast %30 : vector<8xf32> to vector<8x1xf32>
    %cst_15 = arith.constant 8.000000e+00 : f32
    %32 = vector.broadcast %cst_15 : f32 to vector<8x1xf32>
    %33 = arith.divf %31, %32 : vector<8x1xf32>
    %cst_16 = arith.constant dense<0.000000e+00> : vector<8xf32>
    %34 = vector.multi_reduction <add>, %29, %cst_16 [1] : vector<8x8xf32> to vector<8xf32>
    %35 = vector.shape_cast %34 : vector<8xf32> to vector<8x1xf32>
    %cst_17 = arith.constant 8.000000e+00 : f32
    %36 = vector.broadcast %cst_17 : f32 to vector<8x1xf32>
    %37 = arith.divf %35, %36 : vector<8x1xf32>
    %38 = arith.mulf %28, %28 : vector<8x8xf32>
    %cst_18 = arith.constant dense<0.000000e+00> : vector<8xf32>
    %39 = vector.multi_reduction <add>, %38, %cst_18 [1] : vector<8x8xf32> to vector<8xf32>
    %40 = vector.shape_cast %39 : vector<8xf32> to vector<8x1xf32>
    %cst_19 = arith.constant 8.000000e+00 : f32
    %41 = vector.broadcast %cst_19 : f32 to vector<8x1xf32>
    %42 = arith.divf %40, %41 : vector<8x1xf32>
    %43 = arith.mulf %33, %33 : vector<8x1xf32>
    %44 = arith.subf %42, %43 : vector<8x1xf32>
    %45 = arith.mulf %29, %29 : vector<8x8xf32>
    %cst_20 = arith.constant dense<0.000000e+00> : vector<8xf32>
    %46 = vector.multi_reduction <add>, %45, %cst_20 [1] : vector<8x8xf32> to vector<8xf32>
    %47 = vector.shape_cast %46 : vector<8xf32> to vector<8x1xf32>
    %cst_21 = arith.constant 8.000000e+00 : f32
    %48 = vector.broadcast %cst_21 : f32 to vector<8x1xf32>
    %49 = arith.divf %47, %48 : vector<8x1xf32>
    %50 = arith.mulf %37, %37 : vector<8x1xf32>
    %51 = arith.subf %49, %50 : vector<8x1xf32>
    %52 = tpu.iota {dimensions = array<i32: 1>} : vector<8x16xi32>
    %c8_i32 = arith.constant 8 : i32
    %53 = vector.broadcast %c8_i32 : i32 to vector<8x16xi32>
    %54 = arith.cmpi slt, %52, %53 : vector<8x16xi32>
    %55 = vector.shape_cast %33 : vector<8x1xf32> to vector<8x1xf32>
    %56 = vector.broadcast %55 : vector<8x1xf32> to vector<8x16xf32>
    %57 = vector.shape_cast %37 : vector<8x1xf32> to vector<8x1xf32>
    %58 = vector.broadcast %57 : vector<8x1xf32> to vector<8x16xf32>
    %59 = arith.select %54, %56, %58 : vector<8x16xi1>, vector<8x16xf32>
    %cst_22 = arith.constant 9.99999974E-6 : f32
    %60 = vector.broadcast %cst_22 : f32 to vector<8x1xf32>
    %61 = arith.addf %44, %60 : vector<8x1xf32>
    %62 = math.rsqrt %61 : vector<8x1xf32>
    %cst_23 = arith.constant 9.99999974E-6 : f32
    %63 = vector.broadcast %cst_23 : f32 to vector<8x1xf32>
    %64 = arith.addf %51, %63 : vector<8x1xf32>
    %65 = math.rsqrt %64 : vector<8x1xf32>
    %66 = vector.shape_cast %62 : vector<8x1xf32> to vector<8x1xf32>
    %67 = vector.broadcast %66 : vector<8x1xf32> to vector<8x16xf32>
    %68 = vector.shape_cast %65 : vector<8x1xf32> to vector<8x1xf32>
    %69 = vector.broadcast %68 : vector<8x1xf32> to vector<8x16xf32>
    %70 = arith.select %54, %67, %69 : vector<8x16xi1>, vector<8x16xf32>
    %71 = arith.subf %27, %59 : vector<8x16xf32>
    %72 = arith.mulf %71, %70 : vector<8x16xf32>
    %c0_24 = arith.constant 0 : index
    %c0_25 = arith.constant 0 : index
    %73 = vector.load %arg5[%c0_24, %c0_25] : memref<1x16xf32, #tpu.memory_space<vmem>>, vector<1x16xf32>
    %74 = vector.broadcast %73 : vector<1x16xf32> to vector<8x16xf32>
    %75 = arith.mulf %72, %74 : vector<8x16xf32>
    %c0_26 = arith.constant 0 : index
    %c0_27 = arith.constant 0 : index
    %76 = vector.load %arg6[%c0_26, %c0_27] : memref<1x16xf32, #tpu.memory_space<vmem>>, vector<1x16xf32>
    %77 = vector.broadcast %76 : vector<1x16xf32> to vector<8x16xf32>
    %78 = arith.addf %75, %77 : vector<8x16xf32>
    %c0_28 = arith.constant 0 : index
    %c0_29 = arith.constant 0 : index
    %c0_30 = arith.constant 0 : index
    %79 = vector.load %arg7[%c0_28, %c0_29, %c0_30] : memref<1x8x16xf32, #tpu.memory_space<vmem>>, vector<1x8x16xf32>
    %80 = vector.shape_cast %79 : vector<1x8x16xf32> to vector<8x16xf32>
    %81 = vector.shape_cast %78 : vector<8x16xf32> to vector<1x8x16xf32>
    tpu.vector_store %arg7[%c0_28, %c0_29, %c0_30], %81 {strides = array<i32>} : memref<1x8x16xf32, #tpu.memory_space<vmem>>, vector<1x8x16xf32>,
    return
  }
  func.func @transform_0(%arg0: i32, %arg1: i32) -> (i32, i32, i32) {
    %c0_i32 = arith.constant 0 : i32
    %c0_i32_0 = arith.constant 0 : i32
    return %arg0, %arg1, %c0_i32 : i32, i32, i32
  }
  func.func @transform_1(%arg0: i32, %arg1: i32) -> (i32, i32) {
    %c0_i32 = arith.constant 0 : i32
    %c0_i32_0 = arith.constant 0 : i32
    %c0_i32_1 = arith.constant 0 : i32
    return %c0_i32, %c0_i32_0 : i32, i32
  }
  func.func @transform_2(%arg0: i32, %arg1: i32) -> (i32, i32) {
    %c0_i32 = arith.constant 0 : i32
    %c0_i32_0 = arith.constant 0 : i32
    %c0_i32_1 = arith.constant 0 : i32
    return %c0_i32, %c0_i32_0 : i32, i32
  }
  func.func @transform_3(%arg0: i32, %arg1: i32) -> (i32, i32) {
    %c0_i32 = arith.constant 0 : i32
    %c0_i32_0 = arith.constant 0 : i32
    %c0_i32_1 = arith.constant 0 : i32
    return %c0_i32, %c0_i32_0 : i32, i32
  }
  func.func @transform_4(%arg0: i32, %arg1: i32) -> (i32, i32) {
    %c0_i32 = arith.constant 0 : i32
    %c0_i32_0 = arith.constant 0 : i32
    %c0_i32_1 = arith.constant 0 : i32
    return %c0_i32, %c0_i32_0 : i32, i32
  }
  func.func @transform_5(%arg0: i32, %arg1: i32) -> (i32, i32, i32) {
    %c0_i32 = arith.constant 0 : i32
    %c0_i32_0 = arith.constant 0 : i32
    return %arg0, %arg1, %c0_i32 : i32, i32, i32
  }
}

</mosaic_0001>

<llo_original>
// kernel: tpu_custom_call.1
$region0: #{tpu_custom_call.1}
  #allocation0 [shape = 'u32[]', space=smem, size = 0x4, offset = 0x4, fixed_abs, tag = 'smem constant byte address 0x4 - core index']
  #allocation1 [shape = 'u32[144,128]{1,0:T(1,128)}', space=vmem, size = 0x12000, scoped, tag = 'internal scratch']
  #allocation2 [shape = 'bf16[3,4]{1,0:T(4,128)(2,1)}', space=vmem, size = 0x400, scoped, tag = 'scratch operand']
  %s0 = inlined_call_operand.vmem [shape: f32[2,8,4], index: 0, kind: input, shape index: {}]
  %s1 = inlined_call_operand.vmem [shape: bf16[16,16], index: 1, kind: input, shape index: {}]
  %s2 = inlined_call_operand.vmem [shape: f32[1,16], index: 2, kind: input, shape index: {}]
  %s3 = inlined_call_operand.vmem [shape: f32[1,16], index: 3, kind: input, shape index: {}]
  %s4 = inlined_call_operand.vmem [shape: f32[1,16], index: 4, kind: input, shape index: {}]
  %s5 = inlined_call_operand.hbm [shape: f32[2,8,16], index: 5, kind: output, shape index: {}]
  %s6 = sld [smem:[#allocation0]]
  $region57: #{tpu_custom_call.1} parent=0
    _
  %s8 = ssub.s32 1, %s6
  %s9 = scalar_select 0, %s8, %s6
  $region1: #{tpu_custom_call.1} parent=0
    #allocation3 [shape = 'u8[8192]{0}', space=vmem, size = 0x2000, scoped, tag = 'output window, operand 0']
    #allocation4 [shape = 's32[2]{0}', space=sflag, size = 0x8, scoped, tag = 'scoped memory for tpu_custom_call.1']
    %10 = vsyncpa [#allocation4], 0
    %s11 = scalar_lea.sflag [#allocation4], 1
    %12 = vsyncpa %s11, 0
    loop: start=0, step=1, limit=4
    $region2: #{tpu_custom_call.1} parent=1 // loop_pre_header
      _
    $region3: #{tpu_custom_call.1} parent=1 // loop_header
      %s14 = sphi 0, %s18
      %p15 = scmp.ge.s32.totalorder %s14, 4
      %s21 = sphi 0, %s33
      %s22 = sphi 0, %s29
      %s23 = sphi 0, %s21
      %s24 = sphi 0, %s22
      %s25 = sphi 0, %s23
      %s26 = sphi 0, %s24
      %s38 = sphi 0, %s40
      %s41 = sphi 0, %s38
      %s42 = sphi 0, %s41
      %s58 = sphi 0, %s42
      %s62 = sphi 0, %s62
      %s64 = sphi 0, %s62
      %s65 = sphi 0, %s64
      %s79 = sphi 0, %s65
      %s83 = sphi 0, %s83
      %s85 = sphi 0, %s83
      %s86 = sphi 0, %s85
      %s100 = sphi 0, %s86
      %s104 = sphi 0, %s104
      %s106 = sphi 0, %s104
      %s107 = sphi 0, %s106
      %s121 = sphi 0, %s107
      %s125 = sphi 0, %s125
      %s127 = sphi 0, %s125
      %s128 = sphi 0, %s127
      %s142 = sphi 0, %s128
      %s150 = sphi 0, %s152
      %s153 = sphi 0, %s150
      %s154 = sphi 0, %s153
      %s170 = sphi 0, %s154
    $region4: #{tpu_custom_call.1} parent=1 // loop_header_branch
      %17 = sbr.rel (%p15) target = $region8
    $region5: #{tpu_custom_call.1} parent=1 // loop_body
      %s19 = ssub.s32 %s14, 1
      %s20 = ssub.s32 %s14, 2
      %s27 = sadd.s32 1, %s22
      %p28 = scmp.ge.s32.totalorder %s27, 1
      %s29 = scalar_select %p28, 0, %s27
      %s30 = sadd.s32 1, %s21
      %s31 = scalar_select %p28, %s30, %s21
      %p32 = scmp.ge.s32.totalorder %s31, 2
      %s33 = scalar_select %p32, 0, %s31
      %s34 = ssub.s32 %s21, %s33
      %s35 = ssub.s32 %s22, %s29
      %s36 = sor.u32 %s34, %s35
      %p37 = scmp.eq.s32.totalorder %s36, 0
      %s39 = sadd.s32 %s38, 1
      %s40 = scalar_select %p37, %s38, %s39
      %p43 = pneg %p37
      %p44 = scmp.eq.s32.totalorder %s14, 1
      %p45 = por %p43, %p44
      %p46 = scmp.ne.s32.totalorder %s38, %s41
      %p47 = scmp.eq.s32.totalorder %s14, 0
      %p48 = por %p46, %p47
      %p49 = scmp.ne.s32.totalorder %s38, %s41
      %p50 = scmp.eq.s32.totalorder %s19, 1
      %p51 = por %p49, %p50
      %p52 = scmp.ne.s32.totalorder %s41, %s42
      %p53 = scmp.eq.s32.totalorder %s19, 0
      %p54 = por %p52, %p53
      %p55 = scmp.ne.s32.totalorder %s41, %s42
      %p56 = scmp.eq.s32.totalorder %s20, 1
      %p57 = por %p55, %p56
      %p59 = scmp.ne.s32.totalorder %s42, %s58
      %p60 = scmp.eq.s32.totalorder %s20, 0
      %p61 = por %p59, %p60
      %s63 = sadd.s32 %s62, 1
      %p66 = scmp.eq.s32.totalorder %s14, 1
      %p67 = scmp.ne.s32.totalorder %s62, %s64
      %p68 = scmp.eq.s32.totalorder %s14, 0
      %p69 = por %p67, %p68
      %p70 = scmp.ne.s32.totalorder %s62, %s64
      %p71 = scmp.eq.s32.totalorder %s19, 1
      %p72 = por %p70, %p71
      %p73 = scmp.ne.s32.totalorder %s64, %s65
      %p74 = scmp.eq.s32.totalorder %s19, 0
      %p75 = por %p73, %p74
      %p76 = scmp.ne.s32.totalorder %s64, %s65
      %p77 = scmp.eq.s32.totalorder %s20, 1
      %p78 = por %p76, %p77
      %p80 = scmp.ne.s32.totalorder %s65, %s79
      %p81 = scmp.eq.s32.totalorder %s20, 0
      %p82 = por %p80, %p81
      %s84 = sadd.s32 %s83, 1
      %p87 = scmp.eq.s32.totalorder %s14, 1
      %p88 = scmp.ne.s32.totalorder %s83, %s85
      %p89 = scmp.eq.s32.totalorder %s14, 0
      %p90 = por %p88, %p89
      %p91 = scmp.ne.s32.totalorder %s83, %s85
      %p92 = scmp.eq.s32.totalorder %s19, 1
      %p93 = por %p91, %p92
      %p94 = scmp.ne.s32.totalorder %s85, %s86
      %p95 = scmp.eq.s32.totalorder %s19, 0
      %p96 = por %p94, %p95
      %p97 = scmp.ne.s32.totalorder %s85, %s86
      %p98 = scmp.eq.s32.totalorder %s20, 1
      %p99 = por %p97, %p98
      %p101 = scmp.ne.s32.totalorder %s86, %s100
      %p102 = scmp.eq.s32.totalorder %s20, 0
      %p103 = por %p101, %p102
      %s105 = sadd.s32 %s104, 1
      %p108 = scmp.eq.s32.totalorder %s14, 1
      %p109 = scmp.ne.s32.totalorder %s104, %s106
      %p110 = scmp.eq.s32.totalorder %s14, 0
      %p111 = por %p109, %p110
      %p112 = scmp.ne.s32.totalorder %s104, %s106
      %p113 = scmp.eq.s32.totalorder %s19, 1
      %p114 = por %p112, %p113
      %p115 = scmp.ne.s32.totalorder %s106, %s107
      %p116 = scmp.eq.s32.totalorder %s19, 0
      %p117 = por %p115, %p116
      %p118 = scmp.ne.s32.totalorder %s106, %s107
      %p119 = scmp.eq.s32.totalorder %s20, 1
      %p120 = por %p118, %p119
      %p122 = scmp.ne.s32.totalorder %s107, %s121
      %p123 = scmp.eq.s32.totalorder %s20, 0
      %p124 = por %p122, %p123
      %s126 = sadd.s32 %s125, 1
      %p129 = scmp.eq.s32.totalorder %s14, 1
      %p130 = scmp.ne.s32.totalorder %s125, %s127
      %p131 = scmp.eq.s32.totalorder %s14, 0
      %p132 = por %p130, %p131
      %p133 = scmp.ne.s32.totalorder %s125, %s127
      %p134 = scmp.eq.s32.totalorder %s19, 1
      %p135 = por %p133, %p134
      %p136 = scmp.ne.s32.totalorder %s127, %s128
      %p137 = scmp.eq.s32.totalorder %s19, 0
      %p138 = por %p136, %p137
      %p139 = scmp.ne.s32.totalorder %s127, %s128
      %p140 = scmp.eq.s32.totalorder %s20, 1
      %p141 = por %p139, %p140
      %p143 = scmp.ne.s32.totalorder %s128, %s142
      %p144 = scmp.eq.s32.totalorder %s20, 0
      %p145 = por %p143, %p144
      %s146 = ssub.s32 %s21, %s33
      %s147 = ssub.s32 %s22, %s29
      %s148 = sor.u32 %s146, %s147
      %p149 = scmp.eq.s32.totalorder %s148, 0
      %s151 = sadd.s32 %s150, 1
      %s152 = scalar_select %p149, %s150, %s151
      %p155 = pneg %p149
      %p156 = scmp.eq.s32.totalorder %s14, 1
      %p157 = por %p155, %p156
      %p158 = scmp.ne.s32.totalorder %s150, %s153
      %p159 = scmp.eq.s32.totalorder %s14, 0
      %p160 = por %p158, %p159
      %p161 = scmp.ne.s32.totalorder %s150, %s153
      %p162 = scmp.eq.s32.totalorder %s19, 1
      %p163 = por %p161, %p162
      %p164 = scmp.ne.s32.totalorder %s153, %s154
      %p165 = scmp.eq.s32.totalorder %s19, 0
      %p166 = por %p164, %p165
      %p167 = scmp.ne.s32.totalorder %s153, %s154
      %p168 = scmp.eq.s32.totalorder %s20, 1
      %p169 = por %p167, %p168
      %p171 = scmp.ne.s32.totalorder %s154, %s170
      %p172 = scmp.eq.s32.totalorder %s20, 0
      %p173 = por %p171, %p172
      %p174 = scmp.le.s32.totalorder 1, %s14
      %p175 = scmp.lt.s32.totalorder %s14, 3
      %p176 = pnand %p174, %p175
      %p177 = pneg %p176
      // Predicated region
      $region9: #{tpu_custom_call.1} parent=5 // pred_check
        _
      $region10: #{tpu_custom_call.1} parent=5 // pred_check_branch
        %179 = sbr.rel (%p176) target = $region12
      $region11: #{tpu_custom_call.1} parent=5 // pred_region
        %s180 = ssub.s32 %s14, 1
        // Predicated region
        $region13: #{tpu_custom_call.1} parent=11 // pred_check
          %p181 = pneg %p75
        $region14: #{tpu_custom_call.1} parent=11 // pred_check_branch
          %183 = sbr.rel (%p181) target = $region16
        $region15: #{tpu_custom_call.1} parent=11 // pred_region
          _
        $region16: #{tpu_custom_call.1} parent=11 // pred_fallthru
          _
        // Predicated region
        $region17: #{tpu_custom_call.1} parent=11 // pred_check
          %p184 = pneg %p96
        $region18: #{tpu_custom_call.1} parent=11 // pred_check_branch
          %186 = sbr.rel (%p184) target = $region20
        $region19: #{tpu_custom_call.1} parent=11 // pred_region
          _
        $region20: #{tpu_custom_call.1} parent=11 // pred_fallthru
          _
        // Predicated region
        $region21: #{tpu_custom_call.1} parent=11 // pred_check
          %p187 = pneg %p117
        $region22: #{tpu_custom_call.1} parent=11 // pred_check_branch
          %189 = sbr.rel (%p187) target = $region24
        $region23: #{tpu_custom_call.1} parent=11 // pred_region
          _
        $region24: #{tpu_custom_call.1} parent=11 // pred_fallthru
          _
        // Predicated region
        $region25: #{tpu_custom_call.1} parent=11 // pred_check
          %p190 = pneg %p138
        $region26: #{tpu_custom_call.1} parent=11 // pred_check_branch
          %192 = sbr.rel (%p190) target = $region28
        $region27: #{tpu_custom_call.1} parent=11 // pred_region
          _
        $region28: #{tpu_custom_call.1} parent=11 // pred_fallthru
          _
      $region12: #{tpu_custom_call.1} parent=5 // pred_fallthru
        _
      %p193 = scmp.lt.s32.totalorder %s14, 2
      // Predicated region
      $region29: #{tpu_custom_call.1} parent=5 // pred_check
        %p194 = pneg %p193
      $region30: #{tpu_custom_call.1} parent=5 // pred_check_branch
        %196 = sbr.rel (%p194) target = $region32
      $region31: #{tpu_custom_call.1} parent=5 // pred_region
        // Predicated region
        $region33: #{tpu_custom_call.1} parent=31 // pred_check
          %p197 = pneg %p48
        $region34: #{tpu_custom_call.1} parent=31 // pred_check_branch
          %199 = sbr.rel (%p197) target = $region36
        $region35: #{tpu_custom_call.1} parent=31 // pred_region
          %p200 = scmp.lt.s32.totalorder %s21, 1
          %s201 = scalar_select %p200, %s21, 1
          %p202 = scmp.lt.s32.totalorder %s22, 0
          %s203 = scalar_select %p202, %s22, 0
          %s204 = sadd.s32 %s203, %s201
          %s205 = smul.addr %s204, 8
          %s206 = scalar_lea.vmem %s0, %s205
        $region36: #{tpu_custom_call.1} parent=31 // pred_fallthru
          _
      $region32: #{tpu_custom_call.1} parent=5 // pred_fallthru
        _
      %p207 = scmp.le.s32.totalorder 1, %s14
      %p208 = scmp.lt.s32.totalorder %s14, 3
      %p209 = pnand %p207, %p208
      %p210 = pneg %p209
      // Predicated region
      $region37: #{tpu_custom_call.1} parent=5 // pred_check
        _
      $region38: #{tpu_custom_call.1} parent=5 // pred_check_branch
        %212 = sbr.rel (%p209) target = $region40
      $region39: #{tpu_custom_call.1} parent=5 // pred_region
        %s213 = ssub.s32 %s14, 1
        %p214 = scmp.lt.s32.totalorder %s23, 1
        %s215 = scalar_select %p214, %s23, 1
        %p216 = scmp.lt.s32.totalorder %s24, 0
        %s217 = scalar_select %p216, %s24, 0
        %s218 = sadd.s32 %s217, %s215
        %s219 = smul.addr %s218, 8
        %s220 = scalar_lea.vmem %s0, %s219
        %p221 = pneg %p54
        %p222 = pneg %p51
        %p223 = pneg %p75
        %p224 = pneg %p72
        %p225 = pneg %p96
        %p226 = pneg %p93
        %p227 = pneg %p117
        %p228 = pneg %p114
        %p229 = pneg %p138
        %p230 = pneg %p135
        %p231 = pneg %p166
        %p232 = pneg %p163
        %s233 = sand.u32 %s153, 1
        %s234 = scalar_lea.sflag [#allocation4], %s233
        %s235 = sand.u32 %s153, 1
        %s236 = smul.addr %s235, 8
        %s237 = scalar_lea.vmem [#allocation3], %s236
        %p238 = scmp.lt.s32.totalorder %s23, 1
        %s239 = scalar_select %p238, %s23, 1
        %p240 = scmp.lt.s32.totalorder %s24, 0
        %s241 = scalar_select %p240, %s24, 0
        %s242 = sadd.s32 %s241, %s239
        %s243 = smul.addr %s242, 8
        %s244 = scalar_lea.vmem %s0, %s243
        %p246 = scmp.eq.s32.totalorder %s24, 0
        // Predicated region
        $region41: #{tpu_custom_call.1} parent=39 // pred_check
          %p247 = pneg %p246
        $region42: #{tpu_custom_call.1} parent=39 // pred_check_branch
          %249 = sbr.rel (%p247) target = $region44
        $region43: #{tpu_custom_call.1} parent=39 // pred_region
          %vm250 = vcmask 25600
          %vm251 = vsmask.f32 1280
          %vm252 = vmand %vm250, %vm251
          %v253 = vld [vmem:[#allocation2] sm:$0x3]
          %v254 = vsel %vm252, 0, %v253
          %255 = vst [vmem:[#allocation2] sm:$0x3] %v254
        $region44: #{tpu_custom_call.1} parent=39 // pred_fallthru
          _
        %v256 = vld [vmem:[%s244] sm:$0xff]
        %v257 = vpack.c.bf16 %v256, %v256
        %v258 = vld [vmem:[#allocation2] sm:$0x3]
        %v260 = vshrl.u32 %v257, 16
        %v262 = vrot.slane %v260, 6
        %v263 = vshll.u32 %v257, 16
        %v265 = vrot.slane %v263, 7
        %v266 = vor.u32 %v262, %v265
        %vm268 = vcmask 1041408
        %vm269 = vsmask.f32 1280
        %vm270 = vmand %vm268, %vm269
        %v271 = vsel %vm270, %v258, %v266
        %v274 = vunpack.c.l.s4 1983009808
        %v275 = vunpack.c.0.s8 %v274
        %v276 = vlaneseq
        %v277 = vshrl.u32 %v276, 7
        %v278 = vsub.s32 %v275, %v277
        %v279 = vrot.slane %v257, %v278
        %v280 = vcombine.high %v279, %v279
        %v282 = vshrl.u32 %v280, 16
        %v284 = vrot.slane %v282, 6
        %v285 = vshll.u32 %v280, 16
        %v287 = vrot.slane %v285, 7
        %v288 = vor.u32 %v284, %v287
        %v289 = vrot.slane %v288, 2
        %vm291 = vcmask 25600
        %vm292 = vmand %vm291, %vm269
        %v293 = vsel %vm292, %v289, %v258
        %294 = vst [vmem:[#allocation2] sm:$0x3] %v293
        %v296 = vshrl.u32 %v271, 16
        %v298 = vrot.slane %v296, 7
        %v299 = vshll.u32 %v271, 16
        %v301 = vor.u32 %v298, %v299
        %302 = vrot.lane.b32.xlu0 %v301, 4
        %v303 = vpop.permute.xlu0 %302
        %v305 = vrot.slane %v271, 7
        %306 = vrot.lane.b32.xlu0 %v305, 8
        %v307 = vpop.permute.xlu0 %306
        %v308 = vrot.slane %v296, 6
        %v309 = vrot.slane %v299, 7
        %v310 = vor.u32 %v308, %v309
        %311 = vrot.lane.b32.xlu0 %v310, 12
        %v312 = vpop.permute.xlu0 %311
        %vm313 = vcmask 31744
        %v315 = vsel %vm313, %v271, %v303
        %vm316 = vcmask 64512
        %v318 = vsel %vm316, %v315, %v307
        %vm319 = vcmask 97280
        %v321 = vsel %vm319, %v318, %v312
        %v322 = vld [vmem:[%s1] sm:$0xf]
        %v323 = vld [vmem:[%s1 + $0x4] sm:$0xf]
        %v324 = vld [vmem:[%s2] sm:$0x1]
        %v326 = vlaneseq
        %v327 = vshrl.u32 %v326, 7
        %v328 = vsub.s32 0, %v327
        %v329 = vrot.slane %v324, %v328
        %v331 = vshrl.u32 %v321, 16
        %v333 = vrot.slane %v331, 1
        %v334 = vshll.u32 %v321, 16
        %v336 = vrot.slane %v334, 2
        %v337 = vor.u32 %v333, %v336
        %v340 = vunpack.c.l.b16 %v322
        %v341 = vunpack.c.l.b16 %v323
        %v342 = vpack.c.b16 %v341, %v340
        %vm344 = vcmask 130048
        %v346 = vsel %vm344, %v337, 0
        %348 = vmatprep.subr.bf16.mxu0 0
        %349 = vmatpush1.bf16.msra.mxu0 0
        %350 = vmatprep.subr.bf16.mxu0 0
        %351 = vmatpush1.bf16.msra.mxu0 0
        %352 = vmatprep.subr.bf16.mxu0 0
        %353 = vmatpush1.bf16.msra.mxu0 0
        %354 = vmatprep.subr.bf16.mxu0 0
        %355 = vmatpush1.bf16.msra.mxu0 0
        %356 = vmatprep.subr.bf16.mxu0 0
        %357 = vmatpush1.bf16.msra.mxu0 0
        %358 = vmatprep.subr.bf16.mxu0 0
        %359 = vmatpush1.bf16.msra.mxu0 0
        %360 = vmatprep.subr.bf16.mxu0 0
        %361 = vmatpush1.bf16.msra.mxu0 0
        %362 = vmatprep.subr.bf16.mxu0 0
        %363 = vmatpush1.bf16.msra.mxu0 %v342
        %364 = vmatprep.subr.bf16.mxu0 0
        %365 = vmatpush2.bf16.msra.mxu0 0
        %366 = vmatprep.subr.bf16.mxu0 0
        %367 = vmatpush2.bf16.msra.mxu0 0
        %368 = vmatprep.subr.bf16.mxu0 0
        %369 = vmatpush2.bf16.msra.mxu0 0
        %370 = vmatprep.subr.bf16.mxu0 0
        %371 = vmatpush2.bf16.msra.mxu0 0
        %372 = vmatprep.subr.bf16.mxu0 0
        %373 = vmatpush2.bf16.msra.mxu0 0
        %374 = vmatprep.subr.bf16.mxu0 0
        %375 = vmatpush2.bf16.msra.mxu0 0
        %376 = vmatprep.subr.bf16.mxu0 0
        %377 = vmatpush2.bf16.msra.mxu0 0
        %378 = vmatprep.subr.bf16.mxu0 0
        %379 = vmatpush2.bf16.msra.mxu0 0
        %380 = vmatprep.mubr.bf16.mxu0 0
        %381 = vmatmul.mubr.bf16.gmra.mxu0 %v346
        %v382 = vpop.f32.mrf.mxu0
        %v383 = vadd.f32 %v329, %v382
        %v384 = vpop.f32.mrf.mxu0
        %v385 = vpop.f32.mrf.mxu0
        %v386 = vpop.f32.mrf.mxu0
        %387 = vdwg.mxu0
        %v388 = vmul.f32 %v383, 0.5
        %v389 = vmul.f32 %v383, 0.70710677
        %v390 = verf.f32.pop %v389
        %v391 = vadd.f32 %v390, 1.0
        %v392 = vmul.f32 %v388, %v391
        %v393 = vsel %vm316, %v392, 0.0
        %394 = vadd.xlane.f32.xlu0 %v393
        %v395 = vpop.xlane.xlu0 %394
        %v396 = vrcp.pop 8.0
        %v397 = vmul.f32 %v395, %v396
        %399 = vrot.lane.b32.xlu0 %v392, 120
        %v400 = vpop.permute.xlu0 %399
        %v402 = vsel %vm316, %v400, 0.0
        %403 = vadd.xlane.f32.xlu0 %v402
        %v404 = vpop.xlane.xlu0 %403
        %v405 = vmul.f32 %v404, %v396
        %v406 = vmul.f32 %v392, %v392
        %v407 = vsel %vm316, %v406, 0.0
        %408 = vadd.xlane.f32.xlu0 %v407
        %v409 = vpop.xlane.xlu0 %408
        %v410 = vmul.f32 %v409, %v396
        %v411 = vmul.f32 %v397, %v397
        %v412 = vsub.f32 %v410, %v411
        %414 = vrot.lane.b32.xlu0 %v406, 120
        %v415 = vpop.permute.xlu0 %414
        %v417 = vsel %vm316, %v415, 0.0
        %418 = vadd.xlane.f32.xlu0 %v417
        %v419 = vpop.xlane.xlu0 %418
        %v420 = vmul.f32 %v419, %v396
        %v421 = vmul.f32 %v405, %v405
        %v422 = vsub.f32 %v420, %v421
        %v423 = vlaneseq
        %v424 = vand.u32 %v423, 127
        %vm425 = vcmp.lt.s32.totalorder %v424, 8
        %v426 = vsel %vm425, %v397, %v405
        %v427 = vadd.f32 %v412, 1e-05
        %v428 = vrsqrt.pop %v427
        %v429 = vadd.f32 %v422, 1e-05
        %v430 = vrsqrt.pop %v429
        %v431 = vsel %vm425, %v428, %v430
        %v432 = vsub.f32 %v392, %v426
        %v433 = vmul.f32 %v432, %v431
        %v434 = vld [vmem:[%s3] sm:$0x1]
        %v436 = vlaneseq
        %v437 = vshrl.u32 %v436, 7
        %v438 = vsub.s32 0, %v437
        %v439 = vrot.slane %v434, %v438
        %v441 = vmul.f32 %v433, %v439
        %v442 = vld [vmem:[%s4] sm:$0x1]
        %v444 = vlaneseq
        %v445 = vshrl.u32 %v444, 7
        %v446 = vsub.s32 0, %v445
        %v447 = vrot.slane %v442, %v446
        %v449 = vadd.f32 %v441, %v447
        %450 = vst.msk [vmem:[%s237] sm:$0xff] %vm344, %v449
        %s451 = sand.u32 %s153, 1
        %s452 = scalar_lea.sflag [#allocation4], %s451
        %s453 = sand.u32 %s153, 1
        %s454 = smul.addr %s453, 8
        %s455 = scalar_lea.vmem [#allocation3], %s454
        // Predicated region
        $region45: #{tpu_custom_call.1} parent=39 // pred_check
          %p456 = pneg %p163
        $region46: #{tpu_custom_call.1} parent=39 // pred_check_branch
          %458 = sbr.rel (%p456) target = $region48
        $region47: #{tpu_custom_call.1} parent=39 // pred_region
          %s460 = ssub.s32 128, 128
          %461 = vsyncadd %s452, %s460
          %s462 = sadd.s32 %s24, %s23
          %s463 = smul.addr %s462, 128
          %s464 = scalar_lea.hbm %s5, %s463
          %s466 = sshll.u32 %s455, 4
          %s467 = int_to_ptr.vmem [resolvable:$true] %s466
          %469 = dma.vmem_to_hbm [thread:$0]  %s467, 128, %s464, %s452
        $region48: #{tpu_custom_call.1} parent=39 // pred_fallthru
          _
      $region40: #{tpu_custom_call.1} parent=5 // pred_fallthru
        _
      %p470 = scmp.le.s32.totalorder 2, %s14
      // Predicated region
      $region49: #{tpu_custom_call.1} parent=5 // pred_check
        %p471 = pneg %p470
      $region50: #{tpu_custom_call.1} parent=5 // pred_check_branch
        %473 = sbr.rel (%p471) target = $region52
      $region51: #{tpu_custom_call.1} parent=5 // pred_region
        %s474 = ssub.s32 %s14, 2
        // Predicated region
        $region53: #{tpu_custom_call.1} parent=51 // pred_check
          %p475 = pneg %p169
        $region54: #{tpu_custom_call.1} parent=51 // pred_check_branch
          %477 = sbr.rel (%p475) target = $region56
        $region55: #{tpu_custom_call.1} parent=51 // pred_region
          %s478 = sand.u32 %s154, 1
          %s479 = scalar_lea.sflag [#allocation4], %s478
          %s480 = sand.u32 %s154, 1
          %s481 = smul.addr %s480, 8
          %s482 = scalar_lea.vmem [#allocation3], %s481
          %483 = dma.done %s479, 128
        $region56: #{tpu_custom_call.1} parent=51 // pred_fallthru
          _
      $region52: #{tpu_custom_call.1} parent=5 // pred_fallthru
        _
    $region6: #{tpu_custom_call.1} parent=1 // loop_footer
      %s18 = sadd.s32 1, %s14
    $region7: #{tpu_custom_call.1} parent=1 // loop_footer_branch
      %13 = sbr.rel target = $region3
    $region8: #{tpu_custom_call.1} parent=1 // loop_exit
      _
    %484 = vsyncpa [#allocation4], 1
    %s485 = scalar_lea.sflag [#allocation4], 1
    %486 = vsyncpa %s485, 1

</llo_original>
